<compile_context>
chip_gen: v7x
topology: tpu7x:2x2x1
jax: 0.10.0
libtpu: 0.0.40
codegen_flags: <defaults>
</compile_context>

<pallas_src>
import jax
import jax.numpy as jnp
from jax.experimental import pallas as pl
from jax.experimental.pallas import tpu as pltpu


def _round_up(x, m):
    return (x + m - 1) // m * m


def _invariant_spec(shape, index_map):
    """BlockSpec for a grid-invariant operand: single-buffer it when the JAX
    version supports pipeline_mode (buys no overlap, halves its VMEM cost)."""
    if hasattr(pl, "Buffered"):
        try:
            return pl.BlockSpec(shape, index_map, pipeline_mode=pl.Buffered(1))
        except Exception:
            pass
    return pl.BlockSpec(shape, index_map)


def q1_kernel(x_ref, w1_ref, b1_ref, w2_ref, b2_ref, o_ref, h_ref):
    """Grid = (batch tiles, vocab tiles); vocab axis innermost ("arbitrary").

    x_ref  : (bm, Dp)  f32   resident across the vocab axis
    w1_ref : (Dp, Hp)  bf16  grid-invariant
    b1_ref : (1, Hp)   f32   grid-invariant
    w2_ref : (Hp, tv)  bf16  streams over the vocab axis
    b2_ref : (1, tv)   f32   streams over the vocab axis
    o_ref  : (bm, Vp)  f32   resident across the vocab axis (logits staging,
                             overwritten with softmax probs on the last step)
    h_ref  : (bm, Hp)  bf16  scratch holding relu(fc1(x)) for this row block
    """
    j = pl.program_id(1)
    tv = w2_ref.shape[1]

    @pl.when(j == 0)
    def _():
        # fc1 + ReLU once per batch tile.  x is cast to bf16 at the dot input
        # (VPU cast hides under the MXU); MXU accumulates in f32.
        h = jnp.dot(x_ref[...].astype(jnp.bfloat16), w1_ref[...],
                    preferred_element_type=jnp.float32)
        h_ref[...] = jnp.maximum(h + b1_ref[...], 0.0).astype(h_ref.dtype)

    # fc2 for this vocab tile; stage raw f32 logits in the resident out block.
    logits = jnp.dot(h_ref[...], w2_ref[...],
                     preferred_element_type=jnp.float32) + b2_ref[...]
    v0 = pl.multiple_of(j * tv, tv)
    o_ref[:, pl.ds(v0, tv)] = logits

    @pl.when(j == pl.num_programs(1) - 1)
    def _():
        # Numerically stable softmax over the full (VMEM-resident) row block.
        # Exact f32 divide so probabilities sum to 1 to float rounding.
        full = o_ref[...]
        m = jnp.max(full, axis=-1, keepdims=True)
        e = jnp.exp(full - m)
        s = jnp.sum(e, axis=-1, keepdims=True)
        o_ref[...] = (e / s).astype(o_ref.dtype)


def prepare_params(w1, b1, w2, b2, *, tv_target=512):
    """Offline parameter prep.

    * fc1 K dim D -> Dp and hidden H -> Hp (multiples of 128) are zero-padded:
      exact (padded x columns are zero; relu(0+0)=0; zero w2 rows add nothing).
    * vocab V -> Vp (multiple of the vocab tile tv); padded logit columns get
      a -1e30 bias so they vanish under softmax and are sliced off afterwards.
    * Weights are cast to bf16 for the MXU; biases stay f32 (f32 epilogue).
    """
    D, H = w1.shape
    V = w2.shape[1]
    Dp = _round_up(D, 128)
    Hp = _round_up(H, 128)
    tv = min(tv_target, _round_up(V, 128))
    Vp = _round_up(V, tv)

    w1p = jnp.zeros((Dp, Hp), jnp.float32).at[:D, :H].set(w1).astype(jnp.bfloat16)
    b1p = jnp.zeros((1, Hp), jnp.float32).at[:, :H].set(b1)
    w2p = jnp.zeros((Hp, Vp), jnp.float32).at[:H, :V].set(w2).astype(jnp.bfloat16)
    b2p = jnp.full((1, Vp), -1e30, jnp.float32).at[:, :V].set(b2)
    return {"w1": w1p, "b1": b1p, "w2": w2p, "b2": b2p,
            "D": D, "V": V, "tv": tv}


def q1_forward(x, params, *, block_b=256, vmem_budget_bytes=32 * 2**20):
    """x: (B, D) f32 -> (B, V) f32 softmax probabilities."""
    w1p, b1p = params["w1"], params["b1"]
    w2p, b2p = params["w2"], params["b2"]
    D, V, tv = params["D"], params["V"], params["tv"]
    B = x.shape[0]
    Dp, Hp = w1p.shape
    Vp = w2p.shape[1]
    nv = Vp // tv

    def vmem_estimate(bm):
        return (2 * bm * Dp * 4        # x block (double buffered)
                + Dp * Hp * 2          # w1 (invariant, single buffered)
                + 8 * Hp * 4           # b1 (sublane-padded)
                + 2 * Hp * tv * 2      # w2 tile (double buffered)
                + 2 * 8 * tv * 4       # b2 tile
                + 2 * bm * Vp * 4      # out / logits row block
                + bm * Hp * 2)         # h scratch

    # Batch tile: biggest that fits the VMEM budget (the (bm, Vp) f32 row
    # block is the dominant item once w2 streams), capped at block_b.
    bm = min(block_b, _round_up(B, 8))
    while bm > 8 and vmem_estimate(bm) > vmem_budget_bytes:
        bm = max(8, _round_up(bm // 2, 8))
    # v7x has two TensorCores: give the "parallel" batch axis >= 2 grid steps
    # whenever the batch is big enough to split (the B=8 demo stays at 1).
    if B >= 16 and bm >= B:
        bm = _round_up((B + 1) // 2, 8)
    Bp = _round_up(B, bm)
    nb = Bp // bm

    xpad = x
    if (Bp, Dp) != x.shape:
        xpad = jnp.zeros((Bp, Dp), x.dtype).at[:B, :D].set(x)

    vmem_limit = int(min(max(vmem_estimate(bm) * 3 // 2 + (2 << 20), 16 * 2**20),
                         48 * 2**20))

    out = pl.pallas_call(
        q1_kernel,
        out_shape=jax.ShapeDtypeStruct((Bp, Vp), jnp.float32),
        grid=(nb, nv),
        in_specs=[
            pl.BlockSpec((bm, Dp), lambda i, j: (i, 0)),     # x: per-batch tile
            _invariant_spec((Dp, Hp), lambda i, j: (0, 0)),  # w1: resident
            _invariant_spec((1, Hp), lambda i, j: (0, 0)),   # b1: resident
            pl.BlockSpec((Hp, tv), lambda i, j: (0, j)),     # w2: streams over V
            pl.BlockSpec((1, tv), lambda i, j: (0, j)),      # b2: streams over V
        ],
        out_specs=pl.BlockSpec((bm, Vp), lambda i, j: (i, 0)),  # row-resident
        scratch_shapes=[pltpu.VMEM((bm, Hp), jnp.bfloat16)],
        compiler_params=pltpu.CompilerParams(
            dimension_semantics=("parallel", "arbitrary"),
            vmem_limit_bytes=vmem_limit,
        ),
    )(xpad, w1p, b1p, w2p, b2p)
    return out[:B, :V]


if __name__ == "__main__":
    # Small shapes consistent with Q1Model.__init__ (hidden_size hard-coded 500).
    word_emb_dim = 32
    ngram = 5
    hidden_size = 500
    vocab_size = 256
    batch = 8
    D = word_emb_dim * ngram   # fc1 input dim = 160

    key = jax.random.PRNGKey(0)
    k_x, k_w1, k_b1, k_w2, k_b2 = jax.random.split(key, 5)

    # nn.Linear stores (out, in); we keep the transposed (in, out) layout so
    # the kernel computes plain x @ W + b.
    x = jax.random.normal(k_x, (batch, D), dtype=jnp.float32)
    w1 = jax.random.normal(k_w1, (D, hidden_size), dtype=jnp.float32) * 0.05
    b1 = jax.random.normal(k_b1, (1, hidden_size), dtype=jnp.float32) * 0.05
    w2 = jax.random.normal(k_w2, (hidden_size, vocab_size), dtype=jnp.float32) * 0.05
    b2 = jax.random.normal(k_b2, (1, vocab_size), dtype=jnp.float32) * 0.05

    params = prepare_params(w1, b1, w2, b2)
    out = q1_forward(x, params)
    out = jax.block_until_ready(out)
    assert out.shape == (batch, vocab_size)
    assert bool(jnp.all(jnp.isfinite(out)))

    # Reference 1: mirrors the kernel's mixed precision (bf16 dots, f32 epilogue).
    h_m = jnp.maximum(
        jnp.dot(x.astype(jnp.bfloat16), w1.astype(jnp.bfloat16),
                preferred_element_type=jnp.float32) + b1, 0.0)
    logits_m = jnp.dot(h_m.astype(jnp.bfloat16), w2.astype(jnp.bfloat16),
                       preferred_element_type=jnp.float32) + b2
    ref_mixed = jax.nn.softmax(logits_m, axis=-1)
    assert jnp.allclose(out, ref_mixed, atol=1e-4, rtol=1e-3)

    # Reference 2: original full-f32 module semantics (looser: bf16 weights).
    ref_f32 = jax.nn.softmax(jnp.maximum(x @ w1 + b1, 0.0) @ w2 + b2, axis=-1)
    assert jnp.allclose(out, ref_f32, atol=2e-3)

    # Rows are exactly normalized (plain f32 divide, no approx reciprocal).
    assert jnp.allclose(jnp.sum(out, axis=-1), 1.0, atol=1e-5)

    print("KERNEL_OK")
</pallas_src>

<mosaic_0001>
module attributes {stable_mosaic.version = 11 : i64} {
  func.func @q1_kernel(%arg0: i32, %arg1: i32, %arg2: memref<8x256xf32, #tpu.memory_space<vmem>>, %arg3: memref<256x512xbf16, #tpu.memory_space<vmem>>, %arg4: memref<1x512xf32, #tpu.memory_space<vmem>>, %arg5: memref<512x256xbf16, #tpu.memory_space<vmem>>, %arg6: memref<1x256xf32, #tpu.memory_space<vmem>>, %arg7: memref<8x256xf32, #tpu.memory_space<vmem>>, %arg8: memref<8x512xbf16, #tpu.memory_space<vmem>>) attributes {dimension_semantics = [#tpu.dimension_semantics<parallel>, #tpu.dimension_semantics<arbitrary>], iteration_bounds = array<i64: 1, 1>, scalar_prefetch = 0 : i64, scratch_operands = 1 : i64, tpu.core_type = #tpu.core_type<tc>, window_params = [{transform_indices = @transform_0, window_bounds = array<i64: 8, 256>}, {pipeline_mode = #tpu.pipeline_mode<synchronous>, transform_indices = @transform_1, window_bounds = array<i64: 256, 512>}, {pipeline_mode = #tpu.pipeline_mode<synchronous>, transform_indices = @transform_2, window_bounds = array<i64: 1, 512>}, {transform_indices = @transform_3, window_bounds = array<i64: 512, 256>}, {transform_indices = @transform_4, window_bounds = array<i64: 1, 256>}, {transform_indices = @transform_5, window_bounds = array<i64: 8, 256>}]} {
    %c0_i32 = arith.constant 0 : i32
    %0 = arith.cmpi eq, %arg1, %c0_i32 : i32
    %1 = arith.extui %0 : i1 to i32
    %c0_i32_0 = arith.constant 0 : i32
    %2 = arith.cmpi ne, %1, %c0_i32_0 : i32
    scf.if %2 {
      %c0_9 = arith.constant 0 : index
      %c0_10 = arith.constant 0 : index
      %16 = vector.load %arg2[%c0_9, %c0_10] : memref<8x256xf32, #tpu.memory_space<vmem>>, vector<8x256xf32>
      %17 = arith.truncf %16 : vector<8x256xf32> to vector<8x256xbf16>
      %c0_11 = arith.constant 0 : index
      %c0_12 = arith.constant 0 : index
      %18 = vector.load %arg3[%c0_11, %c0_12] : memref<256x512xbf16, #tpu.memory_space<vmem>>, vector<256x512xbf16>
      %cst_13 = arith.constant dense<0.000000e+00> : vector<8x512xf32>
      %19 = tpu.matmul %17, %18, %cst_13 {dimension_numbers = #tpu.dot_dimension_numbers<[1], [0], [0], [1], [0, 0, 1, 1], [], []>} : vector<8x256xbf16>, vector<256x512xbf16>, vector<8x512xf32> -> vector<8x512xf32>
      %c0_14 = arith.constant 0 : index
      %c0_15 = arith.constant 0 : index
      %20 = vector.load %arg4[%c0_14, %c0_15] : memref<1x512xf32, #tpu.memory_space<vmem>>, vector<1x512xf32>
      %21 = vector.broadcast %20 : vector<1x512xf32> to vector<8x512xf32>
      %22 = arith.addf %19, %21 : vector<8x512xf32>
      %cst_16 = arith.constant 0.000000e+00 : f32
      %23 = vector.broadcast %cst_16 : f32 to vector<8x512xf32>
      %24 = arith.maximumf %22, %23 : vector<8x512xf32>
      %25 = arith.truncf %24 : vector<8x512xf32> to vector<8x512xbf16>
      %c0_17 = arith.constant 0 : index
      %c0_18 = arith.constant 0 : index
      %26 = vector.load %arg8[%c0_17, %c0_18] : memref<8x512xbf16, #tpu.memory_space<vmem>>, vector<8x512xbf16>
      tpu.vector_store %arg8[%c0_17, %c0_18], %25 {strides = array<i32>} : memref<8x512xbf16, #tpu.memory_space<vmem>>, vector<8x512xbf16>,
    } else {
    }
    %c0 = arith.constant 0 : index
    %c0_1 = arith.constant 0 : index
    %3 = vector.load %arg8[%c0, %c0_1] : memref<8x512xbf16, #tpu.memory_space<vmem>>, vector<8x512xbf16>
    %c0_2 = arith.constant 0 : index
    %c0_3 = arith.constant 0 : index
    %4 = vector.load %arg5[%c0_2, %c0_3] : memref<512x256xbf16, #tpu.memory_space<vmem>>, vector<512x256xbf16>
    %cst = arith.constant dense<0.000000e+00> : vector<8x256xf32>
    %5 = tpu.matmul %3, %4, %cst {dimension_numbers = #tpu.dot_dimension_numbers<[1], [0], [0], [1], [0, 0, 1, 1], [], []>} : vector<8x512xbf16>, vector<512x256xbf16>, vector<8x256xf32> -> vector<8x256xf32>
    %c0_4 = arith.constant 0 : index
    %c0_5 = arith.constant 0 : index
    %6 = vector.load %arg6[%c0_4, %c0_5] : memref<1x256xf32, #tpu.memory_space<vmem>>, vector<1x256xf32>
    %7 = vector.broadcast %6 : vector<1x256xf32> to vector<8x256xf32>
    %8 = arith.addf %5, %7 : vector<8x256xf32>
    %c256_i32 = arith.constant 256 : i32
    %9 = arith.muli %arg1, %c256_i32 : i32
    %10 = tpu.assume_multiple %9, 256 : i32
    %c0_6 = arith.constant 0 : index
    %11 = arith.index_cast %10 : i32 to index
    %12 = vector.load %arg7[%c0_6, %11] : memref<8x256xf32, #tpu.memory_space<vmem>>, vector<8x256xf32>
    tpu.vector_store %arg7[%c0_6, %11], %8 {strides = array<i32>} : memref<8x256xf32, #tpu.memory_space<vmem>>, vector<8x256xf32>,
    %c0_i32_7 = arith.constant 0 : i32
    %13 = arith.cmpi eq, %arg1, %c0_i32_7 : i32
    %14 = arith.extui %13 : i1 to i32
    %c0_i32_8 = arith.constant 0 : i32
    %15 = arith.cmpi ne, %14, %c0_i32_8 : i32
    scf.if %15 {
      %c0_9 = arith.constant 0 : index
      %c0_10 = arith.constant 0 : index
      %16 = vector.load %arg7[%c0_9, %c0_10] : memref<8x256xf32, #tpu.memory_space<vmem>>, vector<8x256xf32>
      %cst_11 = arith.constant dense<0xFF800000> : vector<8xf32>
      %17 = vector.multi_reduction <maximumf>, %16, %cst_11 [1] : vector<8x256xf32> to vector<8xf32>
      %18 = vector.shape_cast %17 : vector<8xf32> to vector<8x1xf32>
      %19 = vector.broadcast %18 : vector<8x1xf32> to vector<8x256xf32>
      %20 = arith.subf %16, %19 : vector<8x256xf32>
      %21 = math.exp %20 : vector<8x256xf32>
      %cst_12 = arith.constant dense<0.000000e+00> : vector<8xf32>
      %22 = vector.multi_reduction <add>, %21, %cst_12 [1] : vector<8x256xf32> to vector<8xf32>
      %23 = vector.shape_cast %22 : vector<8xf32> to vector<8x1xf32>
      %24 = vector.broadcast %23 : vector<8x1xf32> to vector<8x256xf32>
      %25 = arith.divf %21, %24 : vector<8x256xf32>
      %c0_13 = arith.constant 0 : index
      %c0_14 = arith.constant 0 : index
      %26 = vector.load %arg7[%c0_13, %c0_14] : memref<8x256xf32, #tpu.memory_space<vmem>>, vector<8x256xf32>
      tpu.vector_store %arg7[%c0_13, %c0_14], %25 {strides = array<i32>} : memref<8x256xf32, #tpu.memory_space<vmem>>, vector<8x256xf32>,
    } else {
    }
    return
  }
  func.func @transform_0(%arg0: i32, %arg1: i32) -> (i32, i32) {
    %c0_i32 = arith.constant 0 : i32
    %c0_i32_0 = arith.constant 0 : i32
    return %arg0, %c0_i32 : i32, i32
  }
  func.func @transform_1(%arg0: i32, %arg1: i32) -> (i32, i32) {
    %c0_i32 = arith.constant 0 : i32
    %c0_i32_0 = arith.constant 0 : i32
    %c0_i32_1 = arith.constant 0 : i32
    return %c0_i32, %c0_i32_0 : i32, i32
  }
  func.func @transform_2(%arg0: i32, %arg1: i32) -> (i32, i32) {
    %c0_i32 = arith.constant 0 : i32
    %c0_i32_0 = arith.constant 0 : i32
    %c0_i32_1 = arith.constant 0 : i32
    return %c0_i32, %c0_i32_0 : i32, i32
  }
  func.func @transform_3(%arg0: i32, %arg1: i32) -> (i32, i32) {
    %c0_i32 = arith.constant 0 : i32
    %c0_i32_0 = arith.constant 0 : i32
    return %c0_i32, %arg1 : i32, i32
  }
  func.func @transform_4(%arg0: i32, %arg1: i32) -> (i32, i32) {
    %c0_i32 = arith.constant 0 : i32
    %c0_i32_0 = arith.constant 0 : i32
    return %c0_i32, %arg1 : i32, i32
  }
  func.func @transform_5(%arg0: i32, %arg1: i32) -> (i32, i32) {
    %c0_i32 = arith.constant 0 : i32
    %c0_i32_0 = arith.constant 0 : i32
    return %arg0, %c0_i32 : i32, i32
  }
}

</mosaic_0001>

<llo_original>
// kernel: tpu_custom_call.1
$region0: #{tpu_custom_call.1}
  #allocation0 [shape = 'u32[]', space=smem, size = 0x4, offset = 0x4, fixed_abs, tag = 'smem constant byte address 0x4 - core index']
  #allocation1 [shape = 'u32[144,128]{1,0:T(1,128)}', space=vmem, size = 0x12000, scoped, tag = 'internal scratch']
  #allocation2 [shape = 'bf16[8,512]{1,0:T(8,128)(2,1)}', space=vmem, size = 0x2000, scoped, tag = 'scratch operand']
  %s0 = inlined_call_operand.hbm [shape: f32[8,256], index: 0, kind: input, shape index: {}]
  %s1 = inlined_call_operand.hbm [shape: bf16[256,512], index: 1, kind: input, shape index: {}]
  %s2 = inlined_call_operand.vmem [shape: f32[1,512], index: 2, kind: input, shape index: {}]
  %s3 = inlined_call_operand.hbm [shape: bf16[512,256], index: 3, kind: input, shape index: {}]
  %s4 = inlined_call_operand.vmem [shape: f32[1,256], index: 4, kind: input, shape index: {}]
  %s5 = inlined_call_operand.hbm [shape: f32[8,256], index: 5, kind: output, shape index: {}]
  %s6 = sld [smem:[#allocation0]]
  $region50: #{tpu_custom_call.1} parent=0
    _
  %s8 = ssub.s32 1, %s6
  %s9 = scalar_select 0, %s8, %s6
  $region1: #{tpu_custom_call.1} parent=0
    #allocation3 [shape = 'u8[8192]{0}', space=vmem, size = 0x2000, scoped, tag = 'input window, operand 0, single buffered']
    #allocation4 [shape = 's32[1]{0}', space=sflag, size = 0x4, scoped, tag = 'scoped memory for tpu_custom_call.1']
    #allocation5 [shape = 's32[1]{0}', space=sflag, size = 0x4, scoped, tag = 'scoped memory for tpu_custom_call.1']
    #allocation6 [shape = 'u8[262144]{0}', space=vmem, size = 0x40000, scoped, tag = 'input window, operand 1, single buffered']
    #allocation7 [shape = 's32[1]{0}', space=sflag, size = 0x4, scoped, tag = 'scoped memory for tpu_custom_call.1']
    #allocation8 [shape = 'u8[262144]{0}', space=vmem, size = 0x40000, scoped, tag = 'input window, operand 3, single buffered']
    #allocation9 [shape = 'u8[8192]{0}', space=vmem, size = 0x2000, scoped, tag = 'output window, operand 0, single buffered']
    %10 = vsyncpa [#allocation4], 0
    %11 = vsyncpa [#allocation7], 0
    %12 = vsyncpa [#allocation5], 0
    // Predicated region
    $region2: #{tpu_custom_call.1} parent=1 // pred_check
      _
    $region3: #{tpu_custom_call.1} parent=1 // pred_check_branch
      %14 = sbr.rel (0) target = $region5
    $region4: #{tpu_custom_call.1} parent=1 // pred_region
      %s16 = ssub.s32 256, 256
      %17 = vsyncadd [#allocation4], %s16
      %s19 = sshll.u32 [#allocation3], 4
      %s20 = int_to_ptr.vmem [resolvable:$true] %s19
      %22 = dma.hbm_to_vmem [thread:$0]  %s0, 256, %s20, [#allocation4]
    $region5: #{tpu_custom_call.1} parent=1 // pred_fallthru
      _
    // Predicated region
    $region6: #{tpu_custom_call.1} parent=1 // pred_check
      _
    $region7: #{tpu_custom_call.1} parent=1 // pred_check_branch
      %24 = sbr.rel (0) target = $region9
    $region8: #{tpu_custom_call.1} parent=1 // pred_region
      %s26 = ssub.s32 8192, 8192
      %27 = vsyncadd [#allocation7], %s26
      %s28 = sshll.u32 [#allocation6], 4
      %s29 = int_to_ptr.vmem [resolvable:$true] %s28
      %34 = dma.hbm_to_vmem [thread:$0]  %s1, 8192, %s29, [#allocation7], 256, 256, 16
    $region9: #{tpu_custom_call.1} parent=1 // pred_fallthru
      _
    // Predicated region
    $region10: #{tpu_custom_call.1} parent=1 // pred_check
      _
    $region11: #{tpu_custom_call.1} parent=1 // pred_check_branch
      %36 = sbr.rel (0) target = $region13
    $region12: #{tpu_custom_call.1} parent=1 // pred_region
      _
    $region13: #{tpu_custom_call.1} parent=1 // pred_fallthru
      _
    // Predicated region
    $region14: #{tpu_custom_call.1} parent=1 // pred_check
      _
    $region15: #{tpu_custom_call.1} parent=1 // pred_check_branch
      %38 = sbr.rel (0) target = $region17
    $region16: #{tpu_custom_call.1} parent=1 // pred_region
      %s40 = ssub.s32 8192, 8192
      %41 = vsyncadd [#allocation7], %s40
      %s42 = sshll.u32 [#allocation8], 4
      %s43 = int_to_ptr.vmem [resolvable:$true] %s42
      %48 = dma.hbm_to_vmem [thread:$0]  %s3, 8192, %s43, [#allocation7], 128, 128, 8
    $region17: #{tpu_custom_call.1} parent=1 // pred_fallthru
      _
    // Predicated region
    $region18: #{tpu_custom_call.1} parent=1 // pred_check
      _
    $region19: #{tpu_custom_call.1} parent=1 // pred_check_branch
      %50 = sbr.rel (0) target = $region21
    $region20: #{tpu_custom_call.1} parent=1 // pred_region
      _
    $region21: #{tpu_custom_call.1} parent=1 // pred_fallthru
      _
    // Predicated region
    $region22: #{tpu_custom_call.1} parent=1 // pred_check
      _
    $region23: #{tpu_custom_call.1} parent=1 // pred_check_branch
      %52 = sbr.rel (0) target = $region25
    $region24: #{tpu_custom_call.1} parent=1 // pred_region
      %53 = dma.done [#allocation4], 256
    $region25: #{tpu_custom_call.1} parent=1 // pred_fallthru
      _
    // Predicated region
    $region26: #{tpu_custom_call.1} parent=1 // pred_check
      _
    $region27: #{tpu_custom_call.1} parent=1 // pred_check_branch
      %55 = sbr.rel (0) target = $region29
    $region28: #{tpu_custom_call.1} parent=1 // pred_region
      %56 = dma.done [#allocation7], 8192
    $region29: #{tpu_custom_call.1} parent=1 // pred_fallthru
      _
    // Predicated region
    $region30: #{tpu_custom_call.1} parent=1 // pred_check
      _
    $region31: #{tpu_custom_call.1} parent=1 // pred_check_branch
      %58 = sbr.rel (0) target = $region33
    $region32: #{tpu_custom_call.1} parent=1 // pred_region
      %59 = dma.done [#allocation7], 8192
    $region33: #{tpu_custom_call.1} parent=1 // pred_fallthru
      _
    %p60 = scmp.eq.s32.totalorder 0, 0
    // Predicated region
    $region34: #{tpu_custom_call.1} parent=1 // pred_check
      %p61 = pneg %p60
    $region35: #{tpu_custom_call.1} parent=1 // pred_check_branch
      %63 = sbr.rel (%p61) target = $region37
    $region36: #{tpu_custom_call.1} parent=1 // pred_region
      %v64 = vld [vmem:[#allocation3] sm:$0xff]
      %v65 = vld [vmem:[#allocation3 + $0x8] sm:$0xff]
      %v66 = vpack.c.bf16 %v64, %v64
      %v67 = vpack.c.bf16 %v65, %v65
      %v68 = vld [vmem:[#allocation6] sm:$0xff]
      %v69 = vld [vmem:[#allocation6 + $0x8] sm:$0xff]
      %v70 = vld [vmem:[#allocation6 + $0x10] sm:$0xff]
      %v71 = vld [vmem:[#allocation6 + $0x18] sm:$0xff]
      %v72 = vld [vmem:[#allocation6 + $0x20] sm:$0xff]
      %v73 = vld [vmem:[#allocation6 + $0x28] sm:$0xff]
      %v74 = vld [vmem:[#allocation6 + $0x30] sm:$0xff]
      %v75 = vld [vmem:[#allocation6 + $0x38] sm:$0xff]
      %v76 = vld [vmem:[#allocation6 + $0x40] sm:$0xff]
      %v77 = vld [vmem:[#allocation6 + $0x48] sm:$0xff]
      %v78 = vld [vmem:[#allocation6 + $0x50] sm:$0xff]
      %v79 = vld [vmem:[#allocation6 + $0x58] sm:$0xff]
      %v80 = vld [vmem:[#allocation6 + $0x60] sm:$0xff]
      %v81 = vld [vmem:[#allocation6 + $0x68] sm:$0xff]
      %v82 = vld [vmem:[#allocation6 + $0x70] sm:$0xff]
      %v83 = vld [vmem:[#allocation6 + $0x78] sm:$0xff]
      %v84 = vld [vmem:[#allocation6 + $0x80] sm:$0xff]
      %v85 = vld [vmem:[#allocation6 + $0x88] sm:$0xff]
      %v86 = vld [vmem:[#allocation6 + $0x90] sm:$0xff]
      %v87 = vld [vmem:[#allocation6 + $0x98] sm:$0xff]
      %v88 = vld [vmem:[#allocation6 + $0xa0] sm:$0xff]
      %v89 = vld [vmem:[#allocation6 + $0xa8] sm:$0xff]
      %v90 = vld [vmem:[#allocation6 + $0xb0] sm:$0xff]
      %v91 = vld [vmem:[#allocation6 + $0xb8] sm:$0xff]
      %v92 = vld [vmem:[#allocation6 + $0xc0] sm:$0xff]
      %v93 = vld [vmem:[#allocation6 + $0xc8] sm:$0xff]
      %v94 = vld [vmem:[#allocation6 + $0xd0] sm:$0xff]
      %v95 = vld [vmem:[#allocation6 + $0xd8] sm:$0xff]
      %v96 = vld [vmem:[#allocation6 + $0xe0] sm:$0xff]
      %v97 = vld [vmem:[#allocation6 + $0xe8] sm:$0xff]
      %v98 = vld [vmem:[#allocation6 + $0xf0] sm:$0xff]
      %v99 = vld [vmem:[#allocation6 + $0xf8] sm:$0xff]
      %v100 = vld [vmem:[#allocation6 + $0x100] sm:$0xff]
      %v101 = vld [vmem:[#allocation6 + $0x108] sm:$0xff]
      %v102 = vld [vmem:[#allocation6 + $0x110] sm:$0xff]
      %v103 = vld [vmem:[#allocation6 + $0x118] sm:$0xff]
      %v104 = vld [vmem:[#allocation6 + $0x120] sm:$0xff]
      %v105 = vld [vmem:[#allocation6 + $0x128] sm:$0xff]
      %v106 = vld [vmem:[#allocation6 + $0x130] sm:$0xff]
      %v107 = vld [vmem:[#allocation6 + $0x138] sm:$0xff]
      %v108 = vld [vmem:[#allocation6 + $0x140] sm:$0xff]
      %v109 = vld [vmem:[#allocation6 + $0x148] sm:$0xff]
      %v110 = vld [vmem:[#allocation6 + $0x150] sm:$0xff]
      %v111 = vld [vmem:[#allocation6 + $0x158] sm:$0xff]
      %v112 = vld [vmem:[#allocation6 + $0x160] sm:$0xff]
      %v113 = vld [vmem:[#allocation6 + $0x168] sm:$0xff]
      %v114 = vld [vmem:[#allocation6 + $0x170] sm:$0xff]
      %v115 = vld [vmem:[#allocation6 + $0x178] sm:$0xff]
      %v116 = vld [vmem:[#allocation6 + $0x180] sm:$0xff]
      %v117 = vld [vmem:[#allocation6 + $0x188] sm:$0xff]
      %v118 = vld [vmem:[#allocation6 + $0x190] sm:$0xff]
      %v119 = vld [vmem:[#allocation6 + $0x198] sm:$0xff]
      %v120 = vld [vmem:[#allocation6 + $0x1a0] sm:$0xff]
      %v121 = vld [vmem:[#allocation6 + $0x1a8] sm:$0xff]
      %v122 = vld [vmem:[#allocation6 + $0x1b0] sm:$0xff]
      %v123 = vld [vmem:[#allocation6 + $0x1b8] sm:$0xff]
      %v124 = vld [vmem:[#allocation6 + $0x1c0] sm:$0xff]
      %v125 = vld [vmem:[#allocation6 + $0x1c8] sm:$0xff]
      %v126 = vld [vmem:[#allocation6 + $0x1d0] sm:$0xff]
      %v127 = vld [vmem:[#allocation6 + $0x1d8] sm:$0xff]
      %v128 = vld [vmem:[#allocation6 + $0x1e0] sm:$0xff]
      %v129 = vld [vmem:[#allocation6 + $0x1e8] sm:$0xff]
      %v130 = vld [vmem:[#allocation6 + $0x1f0] sm:$0xff]
      %v131 = vld [vmem:[#allocation6 + $0x1f8] sm:$0xff]
      %v132 = vld [vmem:[%s2] sm:$0xf]
      %v134 = vlaneseq
      %v135 = vshrl.u32 %v134, 7
      %v136 = vsub.s32 0, %v135
      %v137 = vrot.slane %v132, %v136
      %v138 = vlaneseq
      %v139 = vshrl.u32 %v138, 7
      %v140 = vsub.s32 1, %v139
      %v141 = vrot.slane %v132, %v140
      %v142 = vlaneseq
      %v143 = vshrl.u32 %v142, 7
      %v144 = vsub.s32 2, %v143
      %v145 = vrot.slane %v132, %v144
      %v146 = vlaneseq
      %v147 = vshrl.u32 %v146, 7
      %v148 = vsub.s32 3, %v147
      %v149 = vrot.slane %v132, %v148
      %v218 = vunpack.c.l.b16 %v68
      %v219 = vunpack.c.h.b16 %v68
      %v220 = vunpack.c.l.b16 %v69
      %v221 = vunpack.c.h.b16 %v69
      %v222 = vunpack.c.l.b16 %v70
      %v223 = vunpack.c.h.b16 %v70
      %v224 = vunpack.c.l.b16 %v71
      %v225 = vunpack.c.h.b16 %v71
      %v226 = vunpack.c.l.b16 %v72
      %v227 = vunpack.c.h.b16 %v72
      %v228 = vunpack.c.l.b16 %v73
      %v229 = vunpack.c.h.b16 %v73
      %v230 = vunpack.c.l.b16 %v74
      %v231 = vunpack.c.h.b16 %v74
      %v232 = vunpack.c.l.b16 %v75
      %v233 = vunpack.c.h.b16 %v75
      %v234 = vunpack.c.l.b16 %v76
      %v235 = vunpack.c.h.b16 %v76
      %v236 = vunpack.c.l.b16 %v77
      %v237 = vunpack.c.h.b16 %v77
      %v238 = vunpack.c.l.b16 %v78
      %v239 = vunpack.c.h.b16 %v78
      %v240 = vunpack.c.l.b16 %v79
      %v241 = vunpack.c.h.b16 %v79
      %v242 = vunpack.c.l.b16 %v80
      %v243 = vunpack.c.h.b16 %v80
      %v244 = vunpack.c.l.b16 %v81
      %v245 = vunpack.c.h.b16 %v81
      %v246 = vunpack.c.l.b16 %v82
      %v247 = vunpack.c.h.b16 %v82
      %v248 = vunpack.c.l.b16 %v83
      %v249 = vunpack.c.h.b16 %v83
      %v250 = vunpack.c.l.b16 %v84
      %v251 = vunpack.c.h.b16 %v84
      %v252 = vunpack.c.l.b16 %v85
      %v253 = vunpack.c.h.b16 %v85
      %v254 = vunpack.c.l.b16 %v86
      %v255 = vunpack.c.h.b16 %v86
      %v256 = vunpack.c.l.b16 %v87
      %v257 = vunpack.c.h.b16 %v87
      %v258 = vunpack.c.l.b16 %v88
      %v259 = vunpack.c.h.b16 %v88
      %v260 = vunpack.c.l.b16 %v89
      %v261 = vunpack.c.h.b16 %v89
      %v262 = vunpack.c.l.b16 %v90
      %v263 = vunpack.c.h.b16 %v90
      %v264 = vunpack.c.l.b16 %v91
      %v265 = vunpack.c.h.b16 %v91
      %v266 = vunpack.c.l.b16 %v92
      %v267 = vunpack.c.h.b16 %v92
      %v268 = vunpack.c.l.b16 %v93
      %v269 = vunpack.c.h.b16 %v93
      %v270 = vunpack.c.l.b16 %v94
      %v271 = vunpack.c.h.b16 %v94
      %v272 = vunpack.c.l.b16 %v95
      %v273 = vunpack.c.h.b16 %v95
      %v274 = vunpack.c.l.b16 %v96
      %v275 = vunpack.c.h.b16 %v96
      %v276 = vunpack.c.l.b16 %v97
      %v277 = vunpack.c.h.b16 %v97
      %v278 = vunpack.c.l.b16 %v98
      %v279 = vunpack.c.h.b16 %v98
      %v280 = vunpack.c.l.b16 %v99
      %v281 = vunpack.c.h.b16 %v99
      %v282 = vunpack.c.l.b16 %v100
      %v283 = vunpack.c.h.b16 %v100
      %v284 = vunpack.c.l.b16 %v101
      %v285 = vunpack.c.h.b16 %v101
      %v286 = vunpack.c.l.b16 %v102
      %v287 = vunpack.c.h.b16 %v102
      %v288 = vunpack.c.l.b16 %v103
      %v289 = vunpack.c.h.b16 %v103
      %v290 = vunpack.c.l.b16 %v104
      %v291 = vunpack.c.h.b16 %v104
      %v292 = vunpack.c.l.b16 %v105
      %v293 = vunpack.c.h.b16 %v105
      %v294 = vunpack.c.l.b16 %v106
      %v295 = vunpack.c.h.b16 %v106
      %v296 = vunpack.c.l.b16 %v107
      %v297 = vunpack.c.h.b16 %v107
      %v298 = vunpack.c.l.b16 %v108
      %v299 = vunpack.c.h.b16 %v108
      %v300 = vunpack.c.l.b16 %v109
      %v301 = vunpack.c.h.b16 %v109
      %v302 = vunpack.c.l.b16 %v110
      %v303 = vunpack.c.h.b16 %v110
      %v304 = vunpack.c.l.b16 %v111
      %v305 = vunpack.c.h.b16 %v111
      %v306 = vunpack.c.l.b16 %v112
      %v307 = vunpack.c.h.b16 %v112
      %v308 = vunpack.c.l.b16 %v113
      %v309 = vunpack.c.h.b16 %v113
      %v310 = vunpack.c.l.b16 %v114
      %v311 = vunpack.c.h.b16 %v114
      %v312 = vunpack.c.l.b16 %v115
      %v313 = vunpack.c.h.b16 %v115
      %v314 = vunpack.c.l.b16 %v116
      %v315 = vunpack.c.h.b16 %v116
      %v316 = vunpack.c.l.b16 %v117
      %v317 = vunpack.c.h.b16 %v117
      %v318 = vunpack.c.l.b16 %v118
      %v319 = vunpack.c.h.b16 %v118
      %v320 = vunpack.c.l.b16 %v119
      %v321 = vunpack.c.h.b16 %v119
      %v322 = vunpack.c.l.b16 %v120
      %v323 = vunpack.c.h.b16 %v120
      %v324 = vunpack.c.l.b16 %v121
      %v325 = vunpack.c.h.b16 %v121
      %v326 = vunpack.c.l.b16 %v122
      %v327 = vunpack.c.h.b16 %v122
      %v328 = vunpack.c.l.b16 %v123
      %v329 = vunpack.c.h.b16 %v123
      %v330 = vunpack.c.l.b16 %v124
      %v331 = vunpack.c.h.b16 %v124
      %v332 = vunpack.c.l.b16 %v125
      %v333 = vunpack.c.h.b16 %v125
      %v334 = vunpack.c.l.b16 %v126
      %v335 = vunpack.c.h.b16 %v126
      %v336 = vunpack.c.l.b16 %v127
      %v337 = vunpack.c.h.b16 %v127
      %v338 = vunpack.c.l.b16 %v128
      %v339 = vunpack.c.h.b16 %v128
      %v340 = vunpack.c.l.b16 %v129
      %v341 = vunpack.c.h.b16 %v129
      %v342 = vunpack.c.l.b16 %v130
      %v343 = vunpack.c.h.b16 %v130
      %v344 = vunpack.c.l.b16 %v131
      %v345 = vunpack.c.h.b16 %v131
      %v346 = vpack.c.b16 %v222, %v218
      %v347 = vpack.c.b16 %v223, %v219
      %v348 = vpack.c.b16 %v224, %v220
      %v349 = vpack.c.b16 %v225, %v221
      %v350 = vpack.c.b16 %v230, %v226
      %v351 = vpack.c.b16 %v231, %v227
      %v352 = vpack.c.b16 %v232, %v228
      %v353 = vpack.c.b16 %v233, %v229
      %v354 = vpack.c.b16 %v238, %v234
      %v355 = vpack.c.b16 %v239, %v235
      %v356 = vpack.c.b16 %v240, %v236
      %v357 = vpack.c.b16 %v241, %v237
      %v358 = vpack.c.b16 %v246, %v242
      %v359 = vpack.c.b16 %v247, %v243
      %v360 = vpack.c.b16 %v248, %v244
      %v361 = vpack.c.b16 %v249, %v245
      %v362 = vpack.c.b16 %v254, %v250
      %v363 = vpack.c.b16 %v255, %v251
      %v364 = vpack.c.b16 %v256, %v252
      %v365 = vpack.c.b16 %v257, %v253
      %v366 = vpack.c.b16 %v262, %v258
      %v367 = vpack.c.b16 %v263, %v259
      %v368 = vpack.c.b16 %v264, %v260
      %v369 = vpack.c.b16 %v265, %v261
      %v370 = vpack.c.b16 %v270, %v266
      %v371 = vpack.c.b16 %v271, %v267
      %v372 = vpack.c.b16 %v272, %v268
      %v373 = vpack.c.b16 %v273, %v269
      %v374 = vpack.c.b16 %v278, %v274
      %v375 = vpack.c.b16 %v279, %v275
      %v376 = vpack.c.b16 %v280, %v276
      %v377 = vpack.c.b16 %v281, %v277
      %v378 = vpack.c.b16 %v286, %v282
      %v379 = vpack.c.b16 %v287, %v283
      %v380 = vpack.c.b16 %v288, %v284
      %v381 = vpack.c.b16 %v289, %v285
      %v382 = vpack.c.b16 %v294, %v290
      %v383 = vpack.c.b16 %v295, %v291
      %v384 = vpack.c.b16 %v296, %v292
      %v385 = vpack.c.b16 %v297, %v293
      %v386 = vpack.c.b16 %v302, %v298
      %v387 = vpack.c.b16 %v303, %v299
      %v388 = vpack.c.b16 %v304, %v300
      %v389 = vpack.c.b16 %v305, %v301
      %v390 = vpack.c.b16 %v310, %v306
      %v391 = vpack.c.b16 %v311, %v307
      %v392 = vpack.c.b16 %v312, %v308
      %v393 = vpack.c.b16 %v313, %v309
      %v394 = vpack.c.b16 %v318, %v314
      %v395 = vpack.c.b16 %v319, %v315
      %v396 = vpack.c.b16 %v320, %v316
      %v397 = vpack.c.b16 %v321, %v317
      %v398 = vpack.c.b16 %v326, %v322
      %v399 = vpack.c.b16 %v327, %v323
      %v400 = vpack.c.b16 %v328, %v324
      %v401 = vpack.c.b16 %v329, %v325
      %v402 = vpack.c.b16 %v334, %v330
      %v403 = vpack.c.b16 %v335, %v331
      %v404 = vpack.c.b16 %v336, %v332
      %v405 = vpack.c.b16 %v337, %v333
      %v406 = vpack.c.b16 %v342, %v338
      %v407 = vpack.c.b16 %v343, %v339
      %v408 = vpack.c.b16 %v344, %v340
      %v409 = vpack.c.b16 %v345, %v341
      %474 = vmatprep.subr.bf16.mxu0 %v347
      %475 = vmatpush1.bf16.msra.mxu0 %v346
      %476 = vmatprep.subr.bf16.mxu0 %v351
      %477 = vmatpush1.bf16.msra.mxu0 %v350
      %478 = vmatprep.subr.bf16.mxu0 %v355
      %479 = vmatpush1.bf16.msra.mxu0 %v354
      %480 = vmatprep.subr.bf16.mxu0 %v359
      %481 = vmatpush1.bf16.msra.mxu0 %v358
      %482 = vmatprep.subr.bf16.mxu0 %v363
      %483 = vmatpush1.bf16.msra.mxu0 %v362
      %484 = vmatprep.subr.bf16.mxu0 %v367
      %485 = vmatpush1.bf16.msra.mxu0 %v366
      %486 = vmatprep.subr.bf16.mxu0 %v371
      %487 = vmatpush1.bf16.msra.mxu0 %v370
      %488 = vmatprep.subr.bf16.mxu0 %v375
      %489 = vmatpush1.bf16.msra.mxu0 %v374
      %490 = vmatprep.subr.bf16.mxu0 %v379
      %491 = vmatpush1.bf16.msra.mxu0 %v378
      %492 = vmatprep.subr.bf16.mxu0 %v383
      %493 = vmatpush1.bf16.msra.mxu0 %v382
      %494 = vmatprep.subr.bf16.mxu0 %v387
      %495 = vmatpush1.bf16.msra.mxu0 %v386
      %496 = vmatprep.subr.bf16.mxu0 %v391
      %497 = vmatpush1.bf16.msra.mxu0 %v390
      %498 = vmatprep.subr.bf16.mxu0 %v395
      %499 = vmatpush1.bf16.msra.mxu0 %v394
      %500 = vmatprep.subr.bf16.mxu0 %v399
      %501 = vmatpush1.bf16.msra.mxu0 %v398
      %502 = vmatprep.subr.bf16.mxu0 %v403
      %503 = vmatpush1.bf16.msra.mxu0 %v402
      %504 = vmatprep.subr.bf16.mxu0 %v407
      %505 = vmatpush1.bf16.msra.mxu0 %v406
      %506 = vmatprep.mubr.bf16.mxu0 %v67
      %507 = vmatmul.mubr.bf16.gmra.mrb[0].mxu0 %v66
      %v508 = vpop.f32.mrb[0].mxu0
      %v509 = vadd.f32 %v137, %v508
      %v510 = vpop.f32.mrb[0].mxu0
      %v511 = vadd.f32 %v141, %v510
      %v512 = vpop.f32.mrb[0].mxu0
      %v513 = vpop.f32.mrb[0].mxu0
      %514 = vdwg.mxu0
      %515 = vmatprep.subr.bf16.mxu0 %v349
      %516 = vmatpush1.bf16.msra.mxu0 %v348
      %517 = vmatprep.subr.bf16.mxu0 %v353
      %518 = vmatpush1.bf16.msra.mxu0 %v352
      %519 = vmatprep.subr.bf16.mxu0 %v357
      %520 = vmatpush1.bf16.msra.mxu0 %v356
      %521 = vmatprep.subr.bf16.mxu0 %v361
      %522 = vmatpush1.bf16.msra.mxu0 %v360
      %523 = vmatprep.subr.bf16.mxu0 %v365
      %524 = vmatpush1.bf16.msra.mxu0 %v364
      %525 = vmatprep.subr.bf16.mxu0 %v369
      %526 = vmatpush1.bf16.msra.mxu0 %v368
      %527 = vmatprep.subr.bf16.mxu0 %v373
      %528 = vmatpush1.bf16.msra.mxu0 %v372
      %529 = vmatprep.subr.bf16.mxu0 %v377
      %530 = vmatpush1.bf16.msra.mxu0 %v376
      %531 = vmatprep.subr.bf16.mxu0 %v381
      %532 = vmatpush1.bf16.msra.mxu0 %v380
      %533 = vmatprep.subr.bf16.mxu0 %v385
      %534 = vmatpush1.bf16.msra.mxu0 %v384
      %535 = vmatprep.subr.bf16.mxu0 %v389
      %536 = vmatpush1.bf16.msra.mxu0 %v388
      %537 = vmatprep.subr.bf16.mxu0 %v393
      %538 = vmatpush1.bf16.msra.mxu0 %v392
      %539 = vmatprep.subr.bf16.mxu0 %v397
      %540 = vmatpush1.bf16.msra.mxu0 %v396
      %541 = vmatprep.subr.bf16.mxu0 %v401
      %542 = vmatpush1.bf16.msra.mxu0 %v400
      %543 = vmatprep.subr.bf16.mxu0 %v405
      %544 = vmatpush1.bf16.msra.mxu0 %v404
      %545 = vmatprep.subr.bf16.mxu0 %v409
      %546 = vmatpush1.bf16.msra.mxu0 %v408
      %547 = vmatprep.mubr.bf16.mxu0 %v67
      %548 = vmatmul.mubr.bf16.gmra.mrb[0].mxu0 %v66
      %v549 = vpop.f32.mrb[0].mxu0
      %v550 = vadd.f32 %v145, %v549
      %v551 = vpop.f32.mrb[0].mxu0
      %v552 = vadd.f32 %v149, %v551
      %v553 = vpop.f32.mrb[0].mxu0
      %v554 = vpop.f32.mrb[0].mxu0
      %555 = vdwg.mxu0
      %v556 = vmax.f32 %v509, 0.0
      %v557 = vmax.f32 %v511, 0.0
      %v558 = vmax.f32 %v550, 0.0
      %v559 = vmax.f32 %v552, 0.0
      %v560 = vpack.c.bf16 %v556, %v556
      %v561 = vpack.c.bf16 %v557, %v557
      %v562 = vpack.c.bf16 %v558, %v558
      %v563 = vpack.c.bf16 %v559, %v559
      %v568 = vunpack.c.l.b16 %v560
      %v569 = vunpack.c.l.b16 %v561
      %v570 = vunpack.c.l.b16 %v562
      %v571 = vunpack.c.l.b16 %v563
      %v572 = vpack.c.b16 %v569, %v568
      %v573 = vpack.c.b16 %v571, %v570
      %576 = vst [vmem:[#allocation2] sm:$0xff] %v572
      %577 = vst [vmem:[#allocation2 + $0x8] sm:$0xff] %v573
    $region37: #{tpu_custom_call.1} parent=1 // pred_fallthru
      _
    %v578 = vld [vmem:[#allocation2] sm:$0xff]
    %v579 = vld [vmem:[#allocation2 + $0x8] sm:$0xff]
    %v580 = vld [vmem:[#allocation8] sm:$0xff]
    %v581 = vld [vmem:[#allocation8 + $0x8] sm:$0xff]
    %v582 = vld [vmem:[#allocation8 + $0x10] sm:$0xff]
    %v583 = vld [vmem:[#allocation8 + $0x18] sm:$0xff]
    %v584 = vld [vmem:[#allocation8 + $0x20] sm:$0xff]
    %v585 = vld [vmem:[#allocation8 + $0x28] sm:$0xff]
    %v586 = vld [vmem:[#allocation8 + $0x30] sm:$0xff]
    %v587 = vld [vmem:[#allocation8 + $0x38] sm:$0xff]
    %v588 = vld [vmem:[#allocation8 + $0x40] sm:$0xff]
    %v589 = vld [vmem:[#allocation8 + $0x48] sm:$0xff]
    %v590 = vld [vmem:[#allocation8 + $0x50] sm:$0xff]
    %v591 = vld [vmem:[#allocation8 + $0x58] sm:$0xff]
    %v592 = vld [vmem:[#allocation8 + $0x60] sm:$0xff]
    %v593 = vld [vmem:[#allocation8 + $0x68] sm:$0xff]
    %v594 = vld [vmem:[#allocation8 + $0x70] sm:$0xff]
    %v595 = vld [vmem:[#allocation8 + $0x78] sm:$0xff]
    %v596 = vld [vmem:[#allocation8 + $0x80] sm:$0xff]
    %v597 = vld [vmem:[#allocation8 + $0x88] sm:$0xff]
    %v598 = vld [vmem:[#allocation8 + $0x90] sm:$0xff]
    %v599 = vld [vmem:[#allocation8 + $0x98] sm:$0xff]
    %v600 = vld [vmem:[#allocation8 + $0xa0] sm:$0xff]
    %v601 = vld [vmem:[#allocation8 + $0xa8] sm:$0xff]
    %v602 = vld [vmem:[#allocation8 + $0xb0] sm:$0xff]
    %v603 = vld [vmem:[#allocation8 + $0xb8] sm:$0xff]
    %v604 = vld [vmem:[#allocation8 + $0xc0] sm:$0xff]
    %v605 = vld [vmem:[#allocation8 + $0xc8] sm:$0xff]
    %v606 = vld [vmem:[#allocation8 + $0xd0] sm:$0xff]
    %v607 = vld [vmem:[#allocation8 + $0xd8] sm:$0xff]
    %v608 = vld [vmem:[#allocation8 + $0xe0] sm:$0xff]
    %v609 = vld [vmem:[#allocation8 + $0xe8] sm:$0xff]
    %v610 = vld [vmem:[#allocation8 + $0xf0] sm:$0xff]
    %v611 = vld [vmem:[#allocation8 + $0xf8] sm:$0xff]
    %v612 = vld [vmem:[#allocation8 + $0x100] sm:$0xff]
    %v613 = vld [vmem:[#allocation8 + $0x108] sm:$0xff]
    %v614 = vld [vmem:[#allocation8 + $0x110] sm:$0xff]
    %v615 = vld [vmem:[#allocation8 + $0x118] sm:$0xff]
    %v616 = vld [vmem:[#allocation8 + $0x120] sm:$0xff]
    %v617 = vld [vmem:[#allocation8 + $0x128] sm:$0xff]
    %v618 = vld [vmem:[#allocation8 + $0x130] sm:$0xff]
    %v619 = vld [vmem:[#allocation8 + $0x138] sm:$0xff]
    %v620 = vld [vmem:[#allocation8 + $0x140] sm:$0xff]
    %v621 = vld [vmem:[#allocation8 + $0x148] sm:$0xff]
    %v622 = vld [vmem:[#allocation8 + $0x150] sm:$0xff]
    %v623 = vld [vmem:[#allocation8 + $0x158] sm:$0xff]
    %v624 = vld [vmem:[#allocation8 + $0x160] sm:$0xff]
    %v625 = vld [vmem:[#allocation8 + $0x168] sm:$0xff]
    %v626 = vld [vmem:[#allocation8 + $0x170] sm:$0xff]
    %v627 = vld [vmem:[#allocation8 + $0x178] sm:$0xff]
    %v628 = vld [vmem:[#allocation8 + $0x180] sm:$0xff]
    %v629 = vld [vmem:[#allocation8 + $0x188] sm:$0xff]
    %v630 = vld [vmem:[#allocation8 + $0x190] sm:$0xff]
    %v631 = vld [vmem:[#allocation8 + $0x198] sm:$0xff]
    %v632 = vld [vmem:[#allocation8 + $0x1a0] sm:$0xff]
    %v633 = vld [vmem:[#allocation8 + $0x1a8] sm:$0xff]
    %v634 = vld [vmem:[#allocation8 + $0x1b0] sm:$0xff]
    %v635 = vld [vmem:[#allocation8 + $0x1b8] sm:$0xff]
    %v636 = vld [vmem:[#allocation8 + $0x1c0] sm:$0xff]
    %v637 = vld [vmem:[#allocation8 + $0x1c8] sm:$0xff]
    %v638 = vld [vmem:[#allocation8 + $0x1d0] sm:$0xff]
    %v639 = vld [vmem:[#allocation8 + $0x1d8] sm:$0xff]
    %v640 = vld [vmem:[#allocation8 + $0x1e0] sm:$0xff]
    %v641 = vld [vmem:[#allocation8 + $0x1e8] sm:$0xff]
    %v642 = vld [vmem:[#allocation8 + $0x1f0] sm:$0xff]
    %v643 = vld [vmem:[#allocation8 + $0x1f8] sm:$0xff]
    %v644 = vld [vmem:[%s4] sm:$0x3]
    %v646 = vlaneseq
    %v647 = vshrl.u32 %v646, 7
    %v648 = vsub.s32 0, %v647
    %v649 = vrot.slane %v644, %v648
    %v650 = vlaneseq
    %v651 = vshrl.u32 %v650, 7
    %v652 = vsub.s32 1, %v651
    %v653 = vrot.slane %v644, %v652
    %v658 = vunpack.c.l.b16 %v578
    %v659 = vunpack.c.h.b16 %v578
    %v660 = vunpack.c.l.b16 %v579
    %v661 = vunpack.c.h.b16 %v579
    %v662 = vpack.c.b16 %v658, %v658
    %v663 = vpack.c.b16 %v659, %v659
    %v664 = vpack.c.b16 %v660, %v660
    %v665 = vpack.c.b16 %v661, %v661
    %v734 = vunpack.c.l.b16 %v580
    %v735 = vunpack.c.h.b16 %v580
    %v736 = vunpack.c.l.b16 %v581
    %v737 = vunpack.c.h.b16 %v581
    %v738 = vunpack.c.l.b16 %v582
    %v739 = vunpack.c.h.b16 %v582
    %v740 = vunpack.c.l.b16 %v583
    %v741 = vunpack.c.h.b16 %v583
    %v742 = vunpack.c.l.b16 %v584
    %v743 = vunpack.c.h.b16 %v584
    %v744 = vunpack.c.l.b16 %v585
    %v745 = vunpack.c.h.b16 %v585
    %v746 = vunpack.c.l.b16 %v586
    %v747 = vunpack.c.h.b16 %v586
    %v748 = vunpack.c.l.b16 %v587
    %v749 = vunpack.c.h.b16 %v587
    %v750 = vunpack.c.l.b16 %v588
    %v751 = vunpack.c.h.b16 %v588
    %v752 = vunpack.c.l.b16 %v589
    %v753 = vunpack.c.h.b16 %v589
    %v754 = vunpack.c.l.b16 %v590
    %v755 = vunpack.c.h.b16 %v590
    %v756 = vunpack.c.l.b16 %v591
    %v757 = vunpack.c.h.b16 %v591
    %v758 = vunpack.c.l.b16 %v592
    %v759 = vunpack.c.h.b16 %v592
    %v760 = vunpack.c.l.b16 %v593
    %v761 = vunpack.c.h.b16 %v593
    %v762 = vunpack.c.l.b16 %v594
    %v763 = vunpack.c.h.b16 %v594
    %v764 = vunpack.c.l.b16 %v595
    %v765 = vunpack.c.h.b16 %v595
    %v766 = vunpack.c.l.b16 %v596
    %v767 = vunpack.c.h.b16 %v596
    %v768 = vunpack.c.l.b16 %v597
    %v769 = vunpack.c.h.b16 %v597
    %v770 = vunpack.c.l.b16 %v598
    %v771 = vunpack.c.h.b16 %v598
    %v772 = vunpack.c.l.b16 %v599
    %v773 = vunpack.c.h.b16 %v599
    %v774 = vunpack.c.l.b16 %v600
    %v775 = vunpack.c.h.b16 %v600
    %v776 = vunpack.c.l.b16 %v601
    %v777 = vunpack.c.h.b16 %v601
    %v778 = vunpack.c.l.b16 %v602
    %v779 = vunpack.c.h.b16 %v602
    %v780 = vunpack.c.l.b16 %v603
    %v781 = vunpack.c.h.b16 %v603
    %v782 = vunpack.c.l.b16 %v604
    %v783 = vunpack.c.h.b16 %v604
    %v784 = vunpack.c.l.b16 %v605
    %v785 = vunpack.c.h.b16 %v605
    %v786 = vunpack.c.l.b16 %v606
    %v787 = vunpack.c.h.b16 %v606
    %v788 = vunpack.c.l.b16 %v607
    %v789 = vunpack.c.h.b16 %v607
    %v790 = vunpack.c.l.b16 %v608
    %v791 = vunpack.c.h.b16 %v608
    %v792 = vunpack.c.l.b16 %v609
    %v793 = vunpack.c.h.b16 %v609
    %v794 = vunpack.c.l.b16 %v610
    %v795 = vunpack.c.h.b16 %v610
    %v796 = vunpack.c.l.b16 %v611
    %v797 = vunpack.c.h.b16 %v611
    %v798 = vunpack.c.l.b16 %v612
    %v799 = vunpack.c.h.b16 %v612
    %v800 = vunpack.c.l.b16 %v613
    %v801 = vunpack.c.h.b16 %v613
    %v802 = vunpack.c.l.b16 %v614
    %v803 = vunpack.c.h.b16 %v614
    %v804 = vunpack.c.l.b16 %v615
    %v805 = vunpack.c.h.b16 %v615
    %v806 = vunpack.c.l.b16 %v616
    %v807 = vunpack.c.h.b16 %v616
    %v808 = vunpack.c.l.b16 %v617
    %v809 = vunpack.c.h.b16 %v617
    %v810 = vunpack.c.l.b16 %v618
    %v811 = vunpack.c.h.b16 %v618
    %v812 = vunpack.c.l.b16 %v619
    %v813 = vunpack.c.h.b16 %v619
    %v814 = vunpack.c.l.b16 %v620
    %v815 = vunpack.c.h.b16 %v620
    %v816 = vunpack.c.l.b16 %v621
    %v817 = vunpack.c.h.b16 %v621
    %v818 = vunpack.c.l.b16 %v622
    %v819 = vunpack.c.h.b16 %v622
    %v820 = vunpack.c.l.b16 %v623
    %v821 = vunpack.c.h.b16 %v623
    %v822 = vunpack.c.l.b16 %v624
    %v823 = vunpack.c.h.b16 %v624
    %v824 = vunpack.c.l.b16 %v625
    %v825 = vunpack.c.h.b16 %v625
    %v826 = vunpack.c.l.b16 %v626
    %v827 = vunpack.c.h.b16 %v626
    %v828 = vunpack.c.l.b16 %v627
    %v829 = vunpack.c.h.b16 %v627
    %v830 = vunpack.c.l.b16 %v628
    %v831 = vunpack.c.h.b16 %v628
    %v832 = vunpack.c.l.b16 %v629
    %v833 = vunpack.c.h.b16 %v629
    %v834 = vunpack.c.l.b16 %v630
    %v835 = vunpack.c.h.b16 %v630
    %v836 = vunpack.c.l.b16 %v631
    %v837 = vunpack.c.h.b16 %v631
    %v838 = vunpack.c.l.b16 %v632
    %v839 = vunpack.c.h.b16 %v632
    %v840 = vunpack.c.l.b16 %v633
    %v841 = vunpack.c.h.b16 %v633
    %v842 = vunpack.c.l.b16 %v634
    %v843 = vunpack.c.h.b16 %v634
    %v844 = vunpack.c.l.b16 %v635
    %v845 = vunpack.c.h.b16 %v635
    %v846 = vunpack.c.l.b16 %v636
    %v847 = vunpack.c.h.b16 %v636
    %v848 = vunpack.c.l.b16 %v637
    %v849 = vunpack.c.h.b16 %v637
    %v850 = vunpack.c.l.b16 %v638
    %v851 = vunpack.c.h.b16 %v638
    %v852 = vunpack.c.l.b16 %v639
    %v853 = vunpack.c.h.b16 %v639
    %v854 = vunpack.c.l.b16 %v640
    %v855 = vunpack.c.h.b16 %v640
    %v856 = vunpack.c.l.b16 %v641
    %v857 = vunpack.c.h.b16 %v641
    %v858 = vunpack.c.l.b16 %v642
    %v859 = vunpack.c.h.b16 %v642
    %v860 = vunpack.c.l.b16 %v643
    %v861 = vunpack.c.h.b16 %v643
    %v862 = vpack.c.b16 %v736, %v734
    %v863 = vpack.c.b16 %v737, %v735
    %v864 = vpack.c.b16 %v740, %v738
    %v865 = vpack.c.b16 %v741, %v739
    %v866 = vpack.c.b16 %v744, %v742
    %v867 = vpack.c.b16 %v745, %v743
    %v868 = vpack.c.b16 %v748, %v746
    %v869 = vpack.c.b16 %v749, %v747
    %v870 = vpack.c.b16 %v752, %v750
    %v871 = vpack.c.b16 %v753, %v751
    %v872 = vpack.c.b16 %v756, %v754
    %v873 = vpack.c.b16 %v757, %v755
    %v874 = vpack.c.b16 %v760, %v758
    %v875 = vpack.c.b16 %v761, %v759
    %v876 = vpack.c.b16 %v764, %v762
    %v877 = vpack.c.b16 %v765, %v763
    %v878 = vpack.c.b16 %v768, %v766
    %v879 = vpack.c.b16 %v769, %v767
    %v880 = vpack.c.b16 %v772, %v770
    %v881 = vpack.c.b16 %v773, %v771
    %v882 = vpack.c.b16 %v776, %v774
    %v883 = vpack.c.b16 %v777, %v775
    %v884 = vpack.c.b16 %v780, %v778
    %v885 = vpack.c.b16 %v781, %v779
    %v886 = vpack.c.b16 %v784, %v782
    %v887 = vpack.c.b16 %v785, %v783
    %v888 = vpack.c.b16 %v788, %v786
    %v889 = vpack.c.b16 %v789, %v787
    %v890 = vpack.c.b16 %v792, %v790
    %v891 = vpack.c.b16 %v793, %v791
    %v892 = vpack.c.b16 %v796, %v794
    %v893 = vpack.c.b16 %v797, %v795
    %v894 = vpack.c.b16 %v800, %v798
    %v895 = vpack.c.b16 %v801, %v799
    %v896 = vpack.c.b16 %v804, %v802
    %v897 = vpack.c.b16 %v805, %v803
    %v898 = vpack.c.b16 %v808, %v806
    %v899 = vpack.c.b16 %v809, %v807
    %v900 = vpack.c.b16 %v812, %v810
    %v901 = vpack.c.b16 %v813, %v811
    %v902 = vpack.c.b16 %v816, %v814
    %v903 = vpack.c.b16 %v817, %v815
    %v904 = vpack.c.b16 %v820, %v818
    %v905 = vpack.c.b16 %v821, %v819
    %v906 = vpack.c.b16 %v824, %v822
    %v907 = vpack.c.b16 %v825, %v823
    %v908 = vpack.c.b16 %v828, %v826
    %v909 = vpack.c.b16 %v829, %v827
    %v910 = vpack.c.b16 %v832, %v830
    %v911 = vpack.c.b16 %v833, %v831
    %v912 = vpack.c.b16 %v836, %v834
    %v913 = vpack.c.b16 %v837, %v835
    %v914 = vpack.c.b16 %v840, %v838
    %v915 = vpack.c.b16 %v841, %v839
    %v916 = vpack.c.b16 %v844, %v842
    %v917 = vpack.c.b16 %v845, %v843
    %v918 = vpack.c.b16 %v848, %v846
    %v919 = vpack.c.b16 %v849, %v847
    %v920 = vpack.c.b16 %v852, %v850
    %v921 = vpack.c.b16 %v853, %v851
    %v922 = vpack.c.b16 %v856, %v854
    %v923 = vpack.c.b16 %v857, %v855
    %v924 = vpack.c.b16 %v860, %v858
    %v925 = vpack.c.b16 %v861, %v859
    %990 = vmatprep.subr.bf16.mxu0 %v863
    %991 = vmatpush1.bf16.msra.mxu0 %v862
    %992 = vmatprep.subr.bf16.mxu0 %v865
    %993 = vmatpush1.bf16.msra.mxu0 %v864
    %994 = vmatprep.subr.bf16.mxu0 %v867
    %995 = vmatpush1.bf16.msra.mxu0 %v866
    %996 = vmatprep.subr.bf16.mxu0 %v869
    %997 = vmatpush1.bf16.msra.mxu0 %v868
    %998 = vmatprep.subr.bf16.mxu0 %v871
    %999 = vmatpush1.bf16.msra.mxu0 %v870
    %1000 = vmatprep.subr.bf16.mxu0 %v873
    %1001 = vmatpush1.bf16.msra.mxu0 %v872
    %1002 = vmatprep.subr.bf16.mxu0 %v875
    %1003 = vmatpush1.bf16.msra.mxu0 %v874
    %1004 = vmatprep.subr.bf16.mxu0 %v877
    %1005 = vmatpush1.bf16.msra.mxu0 %v876
    %1006 = vmatprep.subr.bf16.mxu0 %v879
    %1007 = vmatpush1.bf16.msra.mxu0 %v878
    %1008 = vmatprep.subr.bf16.mxu0 %v881
    %1009 = vmatpush1.bf16.msra.mxu0 %v880
    %1010 = vmatprep.subr.bf16.mxu0 %v883
    %1011 = vmatpush1.bf16.msra.mxu0 %v882
    %1012 = vmatprep.subr.bf16.mxu0 %v885
    %1013 = vmatpush1.bf16.msra.mxu0 %v884
    %1014 = vmatprep.subr.bf16.mxu0 %v887
    %1015 = vmatpush1.bf16.msra.mxu0 %v886
    %1016 = vmatprep.subr.bf16.mxu0 %v889
    %1017 = vmatpush1.bf16.msra.mxu0 %v888
    %1018 = vmatprep.subr.bf16.mxu0 %v891
    %1019 = vmatpush1.bf16.msra.mxu0 %v890
    %1020 = vmatprep.subr.bf16.mxu0 %v893
    %1021 = vmatpush1.bf16.msra.mxu0 %v892
    %1022 = vmatprep.mubr.bf16.mxu0 %v663
    %1023 = vmatmul.mubr.bf16.gmra.mrb[0].mxu0 %v662
    %v1024 = vpop.f32.mrb[0].mxu0
    %v1025 = vadd.f32 %v649, %v1024
    %v1026 = vpop.f32.mrb[0].mxu0
    %v1027 = vadd.f32 %v653, %v1026
    %v1028 = vpop.f32.mrb[0].mxu0
    %v1029 = vpop.f32.mrb[0].mxu0
    %1030 = vdwg.mxu0
    %1031 = vmatprep.subr.bf16.mxu0 %v895
    %1032 = vmatpush1.bf16.msra.mxu0 %v894
    %1033 = vmatprep.subr.bf16.mxu0 %v897
    %1034 = vmatpush1.bf16.msra.mxu0 %v896
    %1035 = vmatprep.subr.bf16.mxu0 %v899
    %1036 = vmatpush1.bf16.msra.mxu0 %v898
    %1037 = vmatprep.subr.bf16.mxu0 %v901
    %1038 = vmatpush1.bf16.msra.mxu0 %v900
    %1039 = vmatprep.subr.bf16.mxu0 %v903
    %1040 = vmatpush1.bf16.msra.mxu0 %v902
    %1041 = vmatprep.subr.bf16.mxu0 %v905
    %1042 = vmatpush1.bf16.msra.mxu0 %v904
    %1043 = vmatprep.subr.bf16.mxu0 %v907
    %1044 = vmatpush1.bf16.msra.mxu0 %v906
    %1045 = vmatprep.subr.bf16.mxu0 %v909
    %1046 = vmatpush1.bf16.msra.mxu0 %v908
    %1047 = vmatprep.subr.bf16.mxu0 %v911
    %1048 = vmatpush1.bf16.msra.mxu0 %v910
    %1049 = vmatprep.subr.bf16.mxu0 %v913
    %1050 = vmatpush1.bf16.msra.mxu0 %v912
    %1051 = vmatprep.subr.bf16.mxu0 %v915
    %1052 = vmatpush1.bf16.msra.mxu0 %v914
    %1053 = vmatprep.subr.bf16.mxu0 %v917
    %1054 = vmatpush1.bf16.msra.mxu0 %v916
    %1055 = vmatprep.subr.bf16.mxu0 %v919
    %1056 = vmatpush1.bf16.msra.mxu0 %v918
    %1057 = vmatprep.subr.bf16.mxu0 %v921
    %1058 = vmatpush1.bf16.msra.mxu0 %v920
    %1059 = vmatprep.subr.bf16.mxu0 %v923
    %1060 = vmatpush1.bf16.msra.mxu0 %v922
    %1061 = vmatprep.subr.bf16.mxu0 %v925
    %1062 = vmatpush1.bf16.msra.mxu0 %v924
    %1063 = vmatprep.mubr.bf16.mxu0 %v665
    %1064 = vmatmul.mubr.bf16.gmra.mrb[0].mxu0 %v664
    %v1065 = vpop.f32.mrb[0].mxu0
    %v1066 = vadd.f32 %v1025, %v1065
    %v1067 = vpop.f32.mrb[0].mxu0
    %v1068 = vadd.f32 %v1027, %v1067
    %v1069 = vpop.f32.mrb[0].mxu0
    %v1070 = vpop.f32.mrb[0].mxu0
    %1071 = vdwg.mxu0
    %s1072 = smul.u32 0, 256
    %s1073 = sshra.s32 %s1072, 7
    %s1074 = sand.u32 %s1072, 127
    %s1075 = smul.addr %s1073, 8
    %s1076 = scalar_lea.vmem [#allocation9], %s1075
    %1077 = vst [vmem:[%s1076] sm:$0xff] %v1066
    %1078 = vst [vmem:[%s1076 + $0x8] sm:$0xff] %v1068
    // Predicated region
    $region38: #{tpu_custom_call.1} parent=1 // pred_check
      %p1079 = pneg %p60
    $region39: #{tpu_custom_call.1} parent=1 // pred_check_branch
      %1081 = sbr.rel (%p1079) target = $region41
    $region40: #{tpu_custom_call.1} parent=1 // pred_region
      %v1082 = vld [vmem:[#allocation9] sm:$0xff]
      %v1083 = vld [vmem:[#allocation9 + $0x8] sm:$0xff]
      %v1084 = vmax.f32 %v1082, %v1083
      %1085 = vmax.xlane.f32.xlu0 %v1084
      %v1086 = vpop.xlane.xlu0 %1085
      %v1087 = vsub.f32 %v1082, %v1086
      %v1088 = vsub.f32 %v1083, %v1086
      %v1089 = vmul.f32 %v1087, 1.442695
      %v1090 = vpow.pop %v1089
      %v1091 = vmul.f32 %v1088, 1.442695
      %v1092 = vpow.pop %v1091
      %v1093 = vadd.f32 %v1090, %v1092
      %1094 = vadd.xlane.f32.xlu0 %v1093
      %v1095 = vpop.xlane.xlu0 %1094
      %v1096 = vrcp.pop %v1095
      %v1097 = vmul.f32 %v1090, %v1096
      %v1098 = vmul.f32 %v1092, %v1096
      %1099 = vst [vmem:[#allocation9] sm:$0xff] %v1097
      %1100 = vst [vmem:[#allocation9 + $0x8] sm:$0xff] %v1098
    $region41: #{tpu_custom_call.1} parent=1 // pred_fallthru
      _
    // Predicated region
    $region42: #{tpu_custom_call.1} parent=1 // pred_check
      _
    $region43: #{tpu_custom_call.1} parent=1 // pred_check_branch
      %1102 = sbr.rel (0) target = $region45
    $region44: #{tpu_custom_call.1} parent=1 // pred_region
      %s1104 = ssub.s32 256, 256
      %1105 = vsyncadd [#allocation5], %s1104
      %s1107 = sshll.u32 [#allocation9], 4
      %s1108 = int_to_ptr.vmem [resolvable:$true] %s1107
      %1110 = dma.vmem_to_hbm [thread:$0]  %s1108, 256, %s5, [#allocation5]
    $region45: #{tpu_custom_call.1} parent=1 // pred_fallthru
      _
    // Predicated region
    $region46: #{tpu_custom_call.1} parent=1 // pred_check
      _
    $region47: #{tpu_custom_call.1} parent=1 // pred_check_branch
      %1112 = sbr.rel (0) target = $region49
    $region48: #{tpu_custom_call.1} parent=1 // pred_region
      %1113 = dma.done [#allocation5], 256
    $region49: #{tpu_custom_call.1} parent=1 // pred_fallthru
      _
    %1114 = vsyncpa [#allocation4], 1
    %1115 = vsyncpa [#allocation7], 1
    %1116 = vsyncpa [#allocation5], 1

</llo_original>
